<compile_context>
chip_gen: v5e
topology: v5e:2x2
jax: 0.10.0
libtpu: 0.0.40
codegen_flags: <defaults>
</compile_context>

<pallas_src>
import jax
import jax.numpy as jnp
from jax.experimental import pallas as pl
from jax.experimental.pallas import tpu as pltpu


def _round_up(x, m):
    return (x + m - 1) // m * m


def _vmem_limit_bytes(*buf_bytes):
    # double-buffered inputs/outputs + headroom, clamped to a range that is safe
    # on all generations (v5e default 16 MiB scoped, v7x physical 64 MiB per TC).
    need = 2 * sum(buf_bytes) + (4 << 20)
    return int(min(max(need, 16 << 20), 48 << 20))


def xtheta_kernel(x_ref, w_ref, o_ref):
    # x_ref: (TM, Fp) bf16   w_ref: (Fp, Hp) bf16 (resident)   o_ref: (TM, Hp) bf16
    o_ref[...] = jnp.dot(
        x_ref[...], w_ref[...], preferred_element_type=jnp.float32
    ).astype(o_ref.dtype)


def agg_prelu_kernel(alpha_ref, a_ref, xt_ref, o_ref):
    # alpha_ref: SMEM (1,) f32
    # a_ref: (TM, Np) bf16 streamed row-block of A_hat
    # xt_ref: (Np, Hp) bf16, resident across the whole grid (index_map is constant)
    # o_ref: (TM, Hp) f32
    g = jnp.dot(a_ref[...], xt_ref[...], preferred_element_type=jnp.float32)
    alpha = alpha_ref[0]
    o_ref[...] = jnp.where(g > 0, g, alpha * g).astype(o_ref.dtype)


def gcn_forward(input_arr, A_hat, W, prelu_alpha):
    """input_arr: (1, N, F) or (N, F); A_hat: (N, N); W: (H, F) torch-style; alpha: scalar."""
    x = jnp.squeeze(input_arr, axis=0) if input_arr.ndim == 3 else input_arr  # (N, F)
    n, f = x.shape
    h = W.shape[0]

    # Tile / padding choices: MXU- and lane-friendly, VMEM-safe on v5e/v6e/v7x.
    tm = min(256, _round_up(n, 16))   # output-row tile (16 = bf16 sublane pack)
    n_p = _round_up(n, tm)
    f_p = _round_up(f, 128)           # 1433 -> 1536 at real shapes
    h_p = _round_up(h, 128)           # lane-dense output stores

    bf16 = jnp.bfloat16
    x_p = jnp.zeros((n_p, f_p), bf16).at[:n, :f].set(x.astype(bf16))
    w_t = jnp.zeros((f_p, h_p), bf16).at[:f, :h].set(W.T.astype(bf16))
    a_p = jnp.zeros((n_p, n_p), bf16).at[:n, :n].set(A_hat.astype(bf16))
    alpha = jnp.asarray(prelu_alpha, jnp.float32).reshape((1,))

    grid_rows = n_p // tm

    # ---- kernel 1: X_theta = X @ W.T  (row-tiled, weight resident) ----
    vmem1 = _vmem_limit_bytes(tm * f_p * 2, f_p * h_p * 2, tm * h_p * 2)
    x_theta = pl.pallas_call(
        xtheta_kernel,
        out_shape=jax.ShapeDtypeStruct((n_p, h_p), bf16),
        grid_spec=pltpu.PrefetchScalarGridSpec(
            num_scalar_prefetch=0,
            grid=(grid_rows,),
            in_specs=[
                pl.BlockSpec((tm, f_p), lambda i: (i, 0)),   # X row-block, streamed
                pl.BlockSpec((f_p, h_p), lambda i: (0, 0)),  # W.T, DMA'd once (resident)
            ],
            out_specs=pl.BlockSpec((tm, h_p), lambda i: (i, 0)),
        ),
        compiler_params=pltpu.CompilerParams(
            dimension_semantics=("parallel",),
            vmem_limit_bytes=vmem1,
        ),
    )(x_p, w_t)

    # ---- kernel 2: out = PReLU(A_hat @ X_theta)  (A streamed, X_theta resident) ----
    vmem2 = _vmem_limit_bytes(tm * n_p * 2, n_p * h_p * 2, tm * h_p * 4)
    out_p = pl.pallas_call(
        agg_prelu_kernel,
        out_shape=jax.ShapeDtypeStruct((n_p, h_p), jnp.float32),
        grid_spec=pltpu.PrefetchScalarGridSpec(
            num_scalar_prefetch=0,
            grid=(grid_rows,),
            in_specs=[
                pl.BlockSpec(memory_space=pltpu.MemorySpace.SMEM),  # alpha scalar
                pl.BlockSpec((tm, n_p), lambda i: (i, 0)),          # A_hat row-block, streamed
                pl.BlockSpec((n_p, h_p), lambda i: (0, 0)),         # X_theta, resident
            ],
            out_specs=pl.BlockSpec((tm, h_p), lambda i: (i, 0)),
        ),
        compiler_params=pltpu.CompilerParams(
            dimension_semantics=("parallel",),
            vmem_limit_bytes=vmem2,
        ),
    )(alpha, a_p, x_theta)

    return out_p[:n, :h]


def _xavier_uniform(key, shape):
    # torch.nn.init.xavier_uniform_ on Linear weight (out, in): gain=1
    fan_out, fan_in = shape
    bound = (6.0 / (fan_in + fan_out)) ** 0.5
    return jax.random.uniform(key, shape, jnp.float32, -bound, bound)


if __name__ == "__main__":
    # Small shapes consistent with the module's forward (real model: F=1433, H=512).
    N_NODE, N_INPUT, N_HIDDEN = 16, 64, 32

    key = jax.random.PRNGKey(0)
    k_x, k_a, k_w = jax.random.split(key, 3)

    input_arr = jax.random.normal(k_x, (1, N_NODE, N_INPUT), jnp.float32)   # 1 x Node x Feat
    A_hat = jax.random.uniform(k_a, (N_NODE, N_NODE), jnp.float32)          # normalized adj stand-in
    W = _xavier_uniform(k_w, (N_HIDDEN, N_INPUT))                           # torch Linear weight (H, F)
    prelu_alpha = 0.25                                                      # PReLU default init

    out = gcn_forward(input_arr, A_hat, W, prelu_alpha)
    jax.block_until_ready(out)
    assert out.shape == (N_NODE, N_HIDDEN)

    # bf16-matched reference (same precision path as the kernel: bf16 inputs, f32 accum).
    x_bf = jnp.squeeze(input_arr, 0).astype(jnp.bfloat16)
    w_bf = W.T.astype(jnp.bfloat16)
    xt_bf = jnp.dot(x_bf, w_bf, preferred_element_type=jnp.float32).astype(jnp.bfloat16)
    gcn_bf = jnp.dot(A_hat.astype(jnp.bfloat16), xt_bf, preferred_element_type=jnp.float32)
    ref_bf = jnp.where(gcn_bf > 0, gcn_bf, prelu_alpha * gcn_bf)
    assert jnp.allclose(out, ref_bf, atol=2e-2, rtol=2e-2)

    # Full-precision PyTorch-semantics reference (loose tolerance: bf16 matmul inputs).
    x_theta_ref = jnp.squeeze(input_arr, 0) @ W.T
    gcn_ref = A_hat @ x_theta_ref
    ref = jnp.where(gcn_ref > 0, gcn_ref, prelu_alpha * gcn_ref)
    assert jnp.allclose(out, ref, atol=1e-1, rtol=1e-1)

    print("KERNEL_OK")
</pallas_src>

<mosaic_0001>
module attributes {stable_mosaic.version = 11 : i64} {
  func.func @xtheta_kernel(%arg0: i32, %arg1: memref<16x128xbf16, #tpu.memory_space<vmem>>, %arg2: memref<128x128xbf16, #tpu.memory_space<vmem>>, %arg3: memref<16x128xbf16, #tpu.memory_space<vmem>>) attributes {dimension_semantics = [#tpu.dimension_semantics<parallel>], iteration_bounds = array<i64: 1>, scalar_prefetch = 0 : i64, scratch_operands = 0 : i64, tpu.core_type = #tpu.core_type<tc>, window_params = [{transform_indices = @transform_0, window_bounds = array<i64: 16, 128>}, {pipeline_mode = #tpu.pipeline_mode<synchronous>, transform_indices = @transform_1, window_bounds = array<i64: 128, 128>}, {transform_indices = @transform_2, window_bounds = array<i64: 16, 128>}]} {
    %c0 = arith.constant 0 : index
    %c0_0 = arith.constant 0 : index
    %0 = vector.load %arg1[%c0, %c0_0] : memref<16x128xbf16, #tpu.memory_space<vmem>>, vector<16x128xbf16>
    %c0_1 = arith.constant 0 : index
    %c0_2 = arith.constant 0 : index
    %1 = vector.load %arg2[%c0_1, %c0_2] : memref<128x128xbf16, #tpu.memory_space<vmem>>, vector<128x128xbf16>
    %cst = arith.constant dense<0.000000e+00> : vector<16x128xf32>
    %2 = tpu.matmul %0, %1, %cst {dimension_numbers = #tpu.dot_dimension_numbers<[1], [0], [0], [1], [0, 0, 1, 1], [], []>} : vector<16x128xbf16>, vector<128x128xbf16>, vector<16x128xf32> -> vector<16x128xf32>
    %3 = arith.truncf %2 : vector<16x128xf32> to vector<16x128xbf16>
    %c0_3 = arith.constant 0 : index
    %c0_4 = arith.constant 0 : index
    %4 = vector.load %arg3[%c0_3, %c0_4] : memref<16x128xbf16, #tpu.memory_space<vmem>>, vector<16x128xbf16>
    tpu.vector_store %arg3[%c0_3, %c0_4], %3 {strides = array<i32>} : memref<16x128xbf16, #tpu.memory_space<vmem>>, vector<16x128xbf16>,
    return
  }
  func.func @transform_0(%arg0: i32) -> (i32, i32) {
    %c0_i32 = arith.constant 0 : i32
    %c0_i32_0 = arith.constant 0 : i32
    return %arg0, %c0_i32 : i32, i32
  }
  func.func @transform_1(%arg0: i32) -> (i32, i32) {
    %c0_i32 = arith.constant 0 : i32
    %c0_i32_0 = arith.constant 0 : i32
    %c0_i32_1 = arith.constant 0 : i32
    return %c0_i32, %c0_i32_0 : i32, i32
  }
  func.func @transform_2(%arg0: i32) -> (i32, i32) {
    %c0_i32 = arith.constant 0 : i32
    %c0_i32_0 = arith.constant 0 : i32
    return %arg0, %c0_i32 : i32, i32
  }
}

</mosaic_0001>

<llo_original>
// kernel: tpu_custom_call.1
$region0: #{tpu_custom_call.1}
  #allocation0 [shape = 'u32[]', space=smem, size = 0x4, offset = 0x4, fixed_abs, tag = 'smem constant byte address 0x4 - core index']
  #allocation1 [shape = 'u32[72,128]{1,0:T(1,128)}', space=vmem, size = 0x9000, scoped, tag = 'internal scratch']
  %s0 = inlined_call_operand.hbm [shape: bf16[16,128], index: 0, kind: input, shape index: {}]
  %s1 = inlined_call_operand.hbm [shape: bf16[128,128], index: 1, kind: input, shape index: {}]
  %s2 = inlined_call_operand.hbm [shape: bf16[16,128], index: 2, kind: output, shape index: {}]
  %s3 = sld [smem:[#allocation0]]
  $region26: #{tpu_custom_call.1} parent=0
    _
  %s5 = ssub.s32 1, %s3
  %s6 = scalar_select 0, %s5, %s3
  $region1: #{tpu_custom_call.1} parent=0
    #allocation2 [shape = 'u8[4096]{0}', space=vmem, size = 0x1000, scoped, tag = 'input window, operand 0, single buffered']
    #allocation3 [shape = 's32[1]{0}', space=sflag, size = 0x4, scoped, tag = 'scoped memory for tpu_custom_call.1']
    #allocation4 [shape = 's32[1]{0}', space=sflag, size = 0x4, scoped, tag = 'scoped memory for tpu_custom_call.1']
    #allocation5 [shape = 'u8[32768]{0}', space=vmem, size = 0x8000, scoped, tag = 'input window, operand 1, single buffered']
    #allocation6 [shape = 's32[1]{0}', space=sflag, size = 0x4, scoped, tag = 'scoped memory for tpu_custom_call.1']
    #allocation7 [shape = 'u8[4096]{0}', space=vmem, size = 0x1000, scoped, tag = 'output window, operand 0, single buffered']
    %7 = vsyncpa [#allocation3], 0
    %8 = vsyncpa [#allocation6], 0
    %9 = vsyncpa [#allocation4], 0
    // Predicated region
    $region2: #{tpu_custom_call.1} parent=1 // pred_check
      _
    $region3: #{tpu_custom_call.1} parent=1 // pred_check_branch
      %11 = sbr.rel (0) target = $region5
    $region4: #{tpu_custom_call.1} parent=1 // pred_region
      %13 = vsyncadd [#allocation3], 0
      %s14 = sshll.u32 %s0, 4
      %s15 = int_to_ptr.hbm [resolvable:$true] %s14
      %s16 = sshll.u32 [#allocation2], 4
      %s17 = int_to_ptr.vmem [resolvable:$true] %s16
      %22 = dma.hbm_to_vmem [thread:$0]  %s15, 128, %s17, [#allocation3], 64, 64, 4
    $region5: #{tpu_custom_call.1} parent=1 // pred_fallthru
      _
    // Predicated region
    $region6: #{tpu_custom_call.1} parent=1 // pred_check
      _
    $region7: #{tpu_custom_call.1} parent=1 // pred_check_branch
      %24 = sbr.rel (0) target = $region9
    $region8: #{tpu_custom_call.1} parent=1 // pred_region
      %26 = vsyncadd [#allocation6], 0
      %s27 = sshll.u32 %s1, 4
      %s28 = int_to_ptr.hbm [resolvable:$true] %s27
      %s29 = sshll.u32 [#allocation5], 4
      %s30 = int_to_ptr.vmem [resolvable:$true] %s29
      %35 = dma.hbm_to_vmem [thread:$0]  %s28, 1024, %s30, [#allocation6], 64, 64, 4
    $region9: #{tpu_custom_call.1} parent=1 // pred_fallthru
      _
    // Predicated region
    $region10: #{tpu_custom_call.1} parent=1 // pred_check
      _
    $region11: #{tpu_custom_call.1} parent=1 // pred_check_branch
      %37 = sbr.rel (0) target = $region13
    $region12: #{tpu_custom_call.1} parent=1 // pred_region
      %39 = dma.done [#allocation3], 128
    $region13: #{tpu_custom_call.1} parent=1 // pred_fallthru
      _
    // Predicated region
    $region14: #{tpu_custom_call.1} parent=1 // pred_check
      _
    $region15: #{tpu_custom_call.1} parent=1 // pred_check_branch
      %41 = sbr.rel (0) target = $region17
    $region16: #{tpu_custom_call.1} parent=1 // pred_region
      %43 = dma.done [#allocation6], 1024
    $region17: #{tpu_custom_call.1} parent=1 // pred_fallthru
      _
    %v44 = vld [vmem:[#allocation2] sm:$0xf]
    %v45 = vld [vmem:[#allocation2 + $0x4] sm:$0xf]
    %v46 = vld [vmem:[#allocation5] sm:$0xf]
    %v47 = vld [vmem:[#allocation5 + $0x4] sm:$0xf]
    %v48 = vld [vmem:[#allocation5 + $0x8] sm:$0xf]
    %v49 = vld [vmem:[#allocation5 + $0xc] sm:$0xf]
    %v50 = vld [vmem:[#allocation5 + $0x10] sm:$0xf]
    %v51 = vld [vmem:[#allocation5 + $0x14] sm:$0xf]
    %v52 = vld [vmem:[#allocation5 + $0x18] sm:$0xf]
    %v53 = vld [vmem:[#allocation5 + $0x1c] sm:$0xf]
    %v54 = vld [vmem:[#allocation5 + $0x20] sm:$0xf]
    %v55 = vld [vmem:[#allocation5 + $0x24] sm:$0xf]
    %v56 = vld [vmem:[#allocation5 + $0x28] sm:$0xf]
    %v57 = vld [vmem:[#allocation5 + $0x2c] sm:$0xf]
    %v58 = vld [vmem:[#allocation5 + $0x30] sm:$0xf]
    %v59 = vld [vmem:[#allocation5 + $0x34] sm:$0xf]
    %v60 = vld [vmem:[#allocation5 + $0x38] sm:$0xf]
    %v61 = vld [vmem:[#allocation5 + $0x3c] sm:$0xf]
    %v64 = vunpack.c.l.b16 %v44
    %v65 = vunpack.c.l.b16 %v45
    %v66 = vpack.c.b16 %v65, %v64
    %v84 = vunpack.c.l.b16 %v46
    %v85 = vunpack.c.l.b16 %v47
    %v86 = vunpack.c.l.b16 %v48
    %v87 = vunpack.c.l.b16 %v49
    %v88 = vunpack.c.l.b16 %v50
    %v89 = vunpack.c.l.b16 %v51
    %v90 = vunpack.c.l.b16 %v52
    %v91 = vunpack.c.l.b16 %v53
    %v92 = vunpack.c.l.b16 %v54
    %v93 = vunpack.c.l.b16 %v55
    %v94 = vunpack.c.l.b16 %v56
    %v95 = vunpack.c.l.b16 %v57
    %v96 = vunpack.c.l.b16 %v58
    %v97 = vunpack.c.l.b16 %v59
    %v98 = vunpack.c.l.b16 %v60
    %v99 = vunpack.c.l.b16 %v61
    %v100 = vpack.c.b16 %v85, %v84
    %v101 = vpack.c.b16 %v87, %v86
    %v102 = vpack.c.b16 %v89, %v88
    %v103 = vpack.c.b16 %v91, %v90
    %v104 = vpack.c.b16 %v93, %v92
    %v105 = vpack.c.b16 %v95, %v94
    %v106 = vpack.c.b16 %v97, %v96
    %v107 = vpack.c.b16 %v99, %v98
    %116 = vmatpush.bf16.msra.mxu0 %v107
    %117 = vmatpush.bf16.msra.mxu0 %v106
    %118 = vmatpush.bf16.msra.mxu0 %v105
    %119 = vmatpush.bf16.msra.mxu0 %v104
    %120 = vmatpush.bf16.msra.mxu0 %v103
    %121 = vmatpush.bf16.msra.mxu0 %v102
    %122 = vmatpush.bf16.msra.mxu0 %v101
    %123 = vmatpush.bf16.msra.mxu0 %v100
    %124 = vmatmul.bf16.gmra.mxu0 %v66
    %v125 = vpop.f32.mrf.mxu0
    %v126 = vadd.f32 0.0, %v125
    %v127 = vpop.f32.mrf.mxu0
    %v128 = vadd.f32 0.0, %v127
    %129 = vdwg.mxu0
    %v130 = vpack.c.bf16 %v126, %v126
    %v131 = vpack.c.bf16 %v128, %v128
    %132 = vst [vmem:[#allocation7] sm:$0xf] %v130
    %133 = vst [vmem:[#allocation7 + $0x4] sm:$0xf] %v131
    // Predicated region
    $region18: #{tpu_custom_call.1} parent=1 // pred_check
      _
    $region19: #{tpu_custom_call.1} parent=1 // pred_check_branch
      %135 = sbr.rel (0) target = $region21
    $region20: #{tpu_custom_call.1} parent=1 // pred_region
      %137 = vsyncadd [#allocation4], 0
      %s138 = sshll.u32 [#allocation7], 4
      %s139 = int_to_ptr.vmem [resolvable:$true] %s138
      %s140 = sshll.u32 %s2, 4
      %s141 = int_to_ptr.hbm [resolvable:$true] %s140
      %146 = dma.vmem_to_hbm [thread:$0]  %s139, 128, %s141, [#allocation4], 64, 64, 4
    $region21: #{tpu_custom_call.1} parent=1 // pred_fallthru
      _
    // Predicated region
    $region22: #{tpu_custom_call.1} parent=1 // pred_check
      _
    $region23: #{tpu_custom_call.1} parent=1 // pred_check_branch
      %148 = sbr.rel (0) target = $region25
    $region24: #{tpu_custom_call.1} parent=1 // pred_region
      %150 = dma.done [#allocation4], 128
    $region25: #{tpu_custom_call.1} parent=1 // pred_fallthru
      _
    %151 = vsyncpa [#allocation3], 1
    %152 = vsyncpa [#allocation6], 1
    %153 = vsyncpa [#allocation4], 1

</llo_original>
